<compile_context>
chip_gen: v5e
topology: v5e:2x2
jax: 0.10.0
libtpu: 0.0.40
codegen_flags: <defaults>
</compile_context>

<pallas_src>
import jax
import jax.numpy as jnp
from jax.experimental import pallas as pl
from jax.experimental.pallas import tpu as pltpu

HIDDEN = 768     # LanguageBind per-modality embedding dim (head in_features = 2*768)
LANE = 128
SUBLANE = 8


def _round_up(x, m):
    return ((x + m - 1) // m) * m


def _make_kernel(t_vid, t_txt, tt_vid, tt_txt, n_vid, n_txt):
    """Kernel factory closing over the static token geometry (all Python ints)."""

    def _accumulate(acc_ref, x_ref, k, tile, total, n_tiles):
        rem = total - (n_tiles - 1) * tile          # tokens in the final tile (1..tile)
        if rem == tile:
            # Tiles divide the token count exactly: plain sums, no mask anywhere.
            @pl.when(k < n_tiles)
            def _():
                acc_ref[...] += jnp.sum(x_ref[...].astype(jnp.float32), axis=1)
        else:
            if n_tiles > 1:
                @pl.when(k < n_tiles - 1)
                def _():
                    acc_ref[...] += jnp.sum(x_ref[...].astype(jnp.float32), axis=1)

            @pl.when(k == n_tiles - 1)
            def _():
                # Ragged final tile: out-of-range tokens must contribute exactly 0.
                tok = jax.lax.broadcasted_iota(jnp.int32, x_ref.shape, 1)
                x = jnp.where(tok < rem, x_ref[...].astype(jnp.float32), 0.0)
                acc_ref[...] += jnp.sum(x, axis=1)

    def kernel(vid_ref, txt_ref, mv_ref, mt_ref, o_ref, vid_acc, txt_acc):
        k = pl.program_id(1)

        @pl.when(k == 0)
        def _():
            vid_acc[...] = jnp.zeros_like(vid_acc)
            txt_acc[...] = jnp.zeros_like(txt_acc)

        # Token-sum pooling in f32 (mean factor folded into Mv/Mt in the wrapper).
        _accumulate(vid_acc, vid_ref, k, tt_vid, t_vid, n_vid)
        _accumulate(txt_acc, txt_ref, k, tt_txt, t_txt, n_txt)

        @pl.when(k == pl.num_programs(1) - 1)
        def _():
            # concat([video, language]) @ W.T  ==  sum_v @ Mv + sum_t @ Mt
            # bf16 MXU operands, f32 accumulation; lane-dense (lp) unmasked output store.
            o_ref[...] = (
                jnp.dot(vid_acc[...].astype(jnp.bfloat16), mv_ref[...],
                        preferred_element_type=jnp.float32)
                + jnp.dot(txt_acc[...].astype(jnp.bfloat16), mt_ref[...],
                          preferred_element_type=jnp.float32))

    return kernel


def _pick_tiles(batch, t_vid, d_vid, t_txt, d_txt):
    """Generation-aware tile sizes + VMEM limit."""
    try:
        vmem_cap = pltpu.get_tpu_info().vmem_capacity_bytes
    except Exception:
        vmem_cap = 64 * 1024 * 1024                  # assume the small (v7x-like) budget

    if vmem_cap >= 100 * 1024 * 1024:                # v5e / v6e: 128 MiB physical VMEM
        vmem_limit = 96 * 1024 * 1024
        tile_budget = 8 * 1024 * 1024                # bytes per bf16 activation tile
    else:                                            # v7x: 64 MiB physical VMEM
        vmem_limit = 48 * 1024 * 1024
        tile_budget = 4 * 1024 * 1024

    # Batch tile: up to 256 (v6e/v7x MXU height), but split into >= 2 tiles when possible
    # so the "parallel" batch axis can shard across v7x's two TensorCores.
    if batch <= SUBLANE:
        tm = batch                                   # single tile == full dim (no raggedness)
    else:
        tm = min(256, _round_up(pl.cdiv(batch, 2), SUBLANE))

    def token_tile(t, d):
        if t <= SUBLANE:
            return t                                 # single tile == full (short) token dim
        per_token = tm * d * 2                       # bf16 bytes per token slab
        cap = max(SUBLANE, (tile_budget // per_token) // SUBLANE * SUBLANE)
        cap = min(cap, 1024)                         # diminishing returns past ~1k tokens
        return min((t // SUBLANE) * SUBLANE, cap)    # never exceed the token dim

    return tm, token_tile(t_vid, d_vid), token_tile(t_txt, d_txt), vmem_limit


def video_text_classif(video_tokens, text_tokens, proj_v, proj_t, w_head):
    """w_head is PyTorch-layout (labels, 2*768); proj_v/proj_t are the stand-in
    per-modality projections to the 768-d LanguageBind embedding space."""
    B, Tv, Dv = video_tokens.shape
    _, Tt, Dt = text_tokens.shape
    labels = w_head.shape[0]
    lp = _round_up(labels, LANE)                     # lane-dense output width

    # ---- Fold mean-pool + projection into the head (f32 contraction, wrapper-side) ----
    #   concat(mean_v @ Pv, mean_t @ Pt) @ W.T == sum_v @ Mv + sum_t @ Mt
    mv = jnp.dot(proj_v / Tv, w_head[:, :HIDDEN].T, preferred_element_type=jnp.float32)
    mt = jnp.dot(proj_t / Tt, w_head[:, HIDDEN:].T, preferred_element_type=jnp.float32)
    mv = jnp.pad(mv, ((0, 0), (0, lp - labels))).astype(jnp.bfloat16)   # (Dv, lp)
    mt = jnp.pad(mt, ((0, 0), (0, lp - labels))).astype(jnp.bfloat16)   # (Dt, lp)

    # Stream the (large) token activations in bf16; no padding pass over them.
    vid = video_tokens.astype(jnp.bfloat16)
    txt = text_tokens.astype(jnp.bfloat16)

    tm, tt_v, tt_t, vmem_limit = _pick_tiles(B, Tv, Dv, Tt, Dt)
    n_b = pl.cdiv(B, tm)
    n_tv = pl.cdiv(Tv, tt_v)
    n_tt = pl.cdiv(Tt, tt_t)
    grid_t = max(n_tv, n_tt)

    def tok_map(n_tiles):
        if n_tiles == grid_t:
            return lambda i, k: (i, k, 0)
        # Clamp so the short modality never indexes past its last tile; the repeated
        # block index lets the pipeline skip the redundant DMA.
        return lambda i, k: (i, jnp.minimum(k, n_tiles - 1), 0)

    resident = lambda i, k: (0, 0)

    out = pl.pallas_call(
        _make_kernel(Tv, Tt, tt_v, tt_t, n_tv, n_tt),
        out_shape=jax.ShapeDtypeStruct((n_b * tm, lp), jnp.float32),
        grid_spec=pltpu.PrefetchScalarGridSpec(
            num_scalar_prefetch=0,
            grid=(n_b, grid_t),
            in_specs=[
                pl.BlockSpec((tm, tt_v, Dv), tok_map(n_tv)),                      # video
                pl.BlockSpec((tm, tt_t, Dt), tok_map(n_tt)),                      # text
                pl.BlockSpec((Dv, lp), resident, pipeline_mode=pl.Buffered(1)),   # Mv
                pl.BlockSpec((Dt, lp), resident, pipeline_mode=pl.Buffered(1)),   # Mt
            ],
            out_specs=pl.BlockSpec((tm, lp), lambda i, k: (i, 0)),
            scratch_shapes=[
                pltpu.VMEM((tm, Dv), jnp.float32),   # video pooled-sum accumulator
                pltpu.VMEM((tm, Dt), jnp.float32),   # text  pooled-sum accumulator
            ],
        ),
        compiler_params=pltpu.CompilerParams(
            # batch tiles shard across v7x's 2 TCs; token axis is the reduction (last).
            dimension_semantics=("parallel", "arbitrary"),
            vmem_limit_bytes=vmem_limit,
        ),
    )(vid, txt, mv, mt)

    # Rows >= B (ragged final batch tile) and columns >= labels are padding.
    return out[:B, :labels]


def _reference(video_tokens, text_tokens, proj_v, proj_t, w_head):
    """Pure-JAX (f32) reference mirroring the PyTorch forward semantics."""
    vid_emb = jnp.mean(video_tokens, axis=1) @ proj_v
    txt_emb = jnp.mean(text_tokens, axis=1) @ proj_t
    features = jnp.concatenate([vid_emb, txt_emb], axis=-1)      # (B, 1536)
    return features @ w_head.T                                   # Linear(1536, labels, bias=False)


if __name__ == "__main__":
    key = jax.random.PRNGKey(0)
    kv, kt, kpv, kpt, kw = jax.random.split(key, 5)

    # Small synthetic multi-modal input (stand-in for the LanguageBind input dict).
    # Deliberately non-tile-aligned (B=2, Tv=10, Tt=7, labels=2) to exercise the
    # ragged-tile masking and label lane-padding paths.
    B, Tv, Dv, Tt, Dt, labels = 2, 10, 32, 7, 48, 2
    video_tokens = jax.random.normal(kv, (B, Tv, Dv), jnp.float32)
    text_tokens = jax.random.normal(kt, (B, Tt, Dt), jnp.float32)

    # Deterministic parameter init.
    proj_v = jax.random.normal(kpv, (Dv, HIDDEN), jnp.float32) / jnp.sqrt(Dv)
    proj_t = jax.random.normal(kpt, (Dt, HIDDEN), jnp.float32) / jnp.sqrt(Dt)
    # nn.Linear(1536, labels, bias=False) default init: U(-1/sqrt(in), 1/sqrt(in))
    bound = 1.0 / jnp.sqrt(2.0 * HIDDEN)
    w_head = jax.random.uniform(kw, (labels, 2 * HIDDEN), jnp.float32, -bound, bound)

    out = video_text_classif(video_tokens, text_tokens, proj_v, proj_t, w_head)
    out = jax.block_until_ready(out)

    ref = _reference(video_tokens, text_tokens, proj_v, proj_t, w_head)
    assert out.shape == (B, labels), out.shape
    # bf16 streaming + bf16 MXU operands (f32 accumulation) vs pure-f32 reference.
    assert jnp.allclose(out, ref, atol=3e-2, rtol=3e-2), (out, ref)

    print("KERNEL_OK")
</pallas_src>

<mosaic_0001>
module attributes {stable_mosaic.version = 11 : i64} {
  func.func @kernel(%arg0: i32, %arg1: i32, %arg2: memref<2x8x32xbf16, #tpu.memory_space<vmem>>, %arg3: memref<2x7x48xbf16, #tpu.memory_space<vmem>>, %arg4: memref<32x128xbf16, #tpu.memory_space<vmem>>, %arg5: memref<48x128xbf16, #tpu.memory_space<vmem>>, %arg6: memref<2x128xf32, #tpu.memory_space<vmem>>, %arg7: memref<2x32xf32, #tpu.memory_space<vmem>>, %arg8: memref<2x48xf32, #tpu.memory_space<vmem>>) attributes {dimension_semantics = [#tpu.dimension_semantics<parallel>, #tpu.dimension_semantics<arbitrary>], iteration_bounds = array<i64: 1, 2>, scalar_prefetch = 0 : i64, scratch_operands = 2 : i64, tpu.core_type = #tpu.core_type<tc>, window_params = [{transform_indices = @transform_0, window_bounds = array<i64: 2, 8, 32>}, {transform_indices = @transform_1, window_bounds = array<i64: 2, 7, 48>}, {pipeline_mode = #tpu.pipeline_mode<synchronous>, transform_indices = @transform_2, window_bounds = array<i64: 32, 128>}, {pipeline_mode = #tpu.pipeline_mode<synchronous>, transform_indices = @transform_3, window_bounds = array<i64: 48, 128>}, {transform_indices = @transform_4, window_bounds = array<i64: 2, 128>}]} {
    %c0_i32 = arith.constant 0 : i32
    %0 = arith.cmpi eq, %arg1, %c0_i32 : i32
    %1 = arith.extui %0 : i1 to i32
    %c0_i32_0 = arith.constant 0 : i32
    %2 = arith.cmpi ne, %1, %c0_i32_0 : i32
    scf.if %2 {
      %cst = arith.constant 0.000000e+00 : f32
      %15 = vector.broadcast %cst : f32 to vector<2x32xf32>
      %c0 = arith.constant 0 : index
      %c0_8 = arith.constant 0 : index
      %16 = vector.load %arg7[%c0, %c0_8] : memref<2x32xf32, #tpu.memory_space<vmem>>, vector<2x32xf32>
      tpu.vector_store %arg7[%c0, %c0_8], %15 {strides = array<i32>} : memref<2x32xf32, #tpu.memory_space<vmem>>, vector<2x32xf32>,
      %cst_9 = arith.constant 0.000000e+00 : f32
      %17 = vector.broadcast %cst_9 : f32 to vector<2x48xf32>
      %c0_10 = arith.constant 0 : index
      %c0_11 = arith.constant 0 : index
      %18 = vector.load %arg8[%c0_10, %c0_11] : memref<2x48xf32, #tpu.memory_space<vmem>>, vector<2x48xf32>
      tpu.vector_store %arg8[%c0_10, %c0_11], %17 {strides = array<i32>} : memref<2x48xf32, #tpu.memory_space<vmem>>, vector<2x48xf32>,
    } else {
    }
    %c1_i32 = arith.constant 1 : i32
    %3 = arith.cmpi slt, %arg1, %c1_i32 : i32
    %4 = arith.extui %3 : i1 to i32
    %c0_i32_1 = arith.constant 0 : i32
    %5 = arith.cmpi ne, %4, %c0_i32_1 : i32
    scf.if %5 {
      %c0 = arith.constant 0 : index
      %c0_8 = arith.constant 0 : index
      %15 = vector.load %arg7[%c0, %c0_8] : memref<2x32xf32, #tpu.memory_space<vmem>>, vector<2x32xf32>
      %c0_9 = arith.constant 0 : index
      %c0_10 = arith.constant 0 : index
      %c0_11 = arith.constant 0 : index
      %16 = vector.load %arg2[%c0_9, %c0_10, %c0_11] : memref<2x8x32xbf16, #tpu.memory_space<vmem>>, vector<2x8x32xbf16>
      %17 = arith.extf %16 : vector<2x8x32xbf16> to vector<2x8x32xf32>
      %cst = arith.constant dense<0.000000e+00> : vector<2x32xf32>
      %18 = vector.multi_reduction <add>, %17, %cst [1] : vector<2x8x32xf32> to vector<2x32xf32>
      %19 = arith.addf %15, %18 : vector<2x32xf32>
      %c0_12 = arith.constant 0 : index
      %c0_13 = arith.constant 0 : index
      %20 = vector.load %arg7[%c0_12, %c0_13] : memref<2x32xf32, #tpu.memory_space<vmem>>, vector<2x32xf32>
      tpu.vector_store %arg7[%c0_12, %c0_13], %19 {strides = array<i32>} : memref<2x32xf32, #tpu.memory_space<vmem>>, vector<2x32xf32>,
    } else {
    }
    %c1_i32_2 = arith.constant 1 : i32
    %6 = arith.cmpi eq, %arg1, %c1_i32_2 : i32
    %7 = arith.extui %6 : i1 to i32
    %c0_i32_3 = arith.constant 0 : i32
    %8 = arith.cmpi ne, %7, %c0_i32_3 : i32
    scf.if %8 {
      %15 = tpu.iota {dimensions = array<i32: 1>} : vector<2x8x32xi32>
      %c2_i32 = arith.constant 2 : i32
      %16 = vector.broadcast %c2_i32 : i32 to vector<2x8x32xi32>
      %17 = arith.cmpi slt, %15, %16 : vector<2x8x32xi32>
      %c0 = arith.constant 0 : index
      %c0_8 = arith.constant 0 : index
      %c0_9 = arith.constant 0 : index
      %18 = vector.load %arg2[%c0, %c0_8, %c0_9] : memref<2x8x32xbf16, #tpu.memory_space<vmem>>, vector<2x8x32xbf16>
      %19 = arith.extf %18 : vector<2x8x32xbf16> to vector<2x8x32xf32>
      %cst = arith.constant 0.000000e+00 : f32
      %20 = vector.broadcast %cst : f32 to vector<2x8x32xf32>
      %21 = arith.select %17, %19, %20 : vector<2x8x32xi1>, vector<2x8x32xf32>
      %c0_10 = arith.constant 0 : index
      %c0_11 = arith.constant 0 : index
      %22 = vector.load %arg7[%c0_10, %c0_11] : memref<2x32xf32, #tpu.memory_space<vmem>>, vector<2x32xf32>
      %cst_12 = arith.constant dense<0.000000e+00> : vector<2x32xf32>
      %23 = vector.multi_reduction <add>, %21, %cst_12 [1] : vector<2x8x32xf32> to vector<2x32xf32>
      %24 = arith.addf %22, %23 : vector<2x32xf32>
      %c0_13 = arith.constant 0 : index
      %c0_14 = arith.constant 0 : index
      %25 = vector.load %arg7[%c0_13, %c0_14] : memref<2x32xf32, #tpu.memory_space<vmem>>, vector<2x32xf32>
      tpu.vector_store %arg7[%c0_13, %c0_14], %24 {strides = array<i32>} : memref<2x32xf32, #tpu.memory_space<vmem>>, vector<2x32xf32>,
    } else {
    }
    %c1_i32_4 = arith.constant 1 : i32
    %9 = arith.cmpi slt, %arg1, %c1_i32_4 : i32
    %10 = arith.extui %9 : i1 to i32
    %c0_i32_5 = arith.constant 0 : i32
    %11 = arith.cmpi ne, %10, %c0_i32_5 : i32
    scf.if %11 {
      %c0 = arith.constant 0 : index
      %c0_8 = arith.constant 0 : index
      %15 = vector.load %arg8[%c0, %c0_8] : memref<2x48xf32, #tpu.memory_space<vmem>>, vector<2x48xf32>
      %c0_9 = arith.constant 0 : index
      %c0_10 = arith.constant 0 : index
      %c0_11 = arith.constant 0 : index
      %16 = vector.load %arg3[%c0_9, %c0_10, %c0_11] : memref<2x7x48xbf16, #tpu.memory_space<vmem>>, vector<2x7x48xbf16>
      %17 = arith.extf %16 : vector<2x7x48xbf16> to vector<2x7x48xf32>
      %cst = arith.constant dense<0.000000e+00> : vector<2x48xf32>
      %18 = vector.multi_reduction <add>, %17, %cst [1] : vector<2x7x48xf32> to vector<2x48xf32>
      %19 = arith.addf %15, %18 : vector<2x48xf32>
      %c0_12 = arith.constant 0 : index
      %c0_13 = arith.constant 0 : index
      %20 = vector.load %arg8[%c0_12, %c0_13] : memref<2x48xf32, #tpu.memory_space<vmem>>, vector<2x48xf32>
      tpu.vector_store %arg8[%c0_12, %c0_13], %19 {strides = array<i32>} : memref<2x48xf32, #tpu.memory_space<vmem>>, vector<2x48xf32>,
    } else {
    }
    %c1_i32_6 = arith.constant 1 : i32
    %12 = arith.cmpi eq, %arg1, %c1_i32_6 : i32
    %13 = arith.extui %12 : i1 to i32
    %c0_i32_7 = arith.constant 0 : i32
    %14 = arith.cmpi ne, %13, %c0_i32_7 : i32
    scf.if %14 {
      %c0 = arith.constant 0 : index
      %c0_8 = arith.constant 0 : index
      %15 = vector.load %arg7[%c0, %c0_8] : memref<2x32xf32, #tpu.memory_space<vmem>>, vector<2x32xf32>
      %16 = arith.truncf %15 : vector<2x32xf32> to vector<2x32xbf16>
      %c0_9 = arith.constant 0 : index
      %c0_10 = arith.constant 0 : index
      %17 = vector.load %arg4[%c0_9, %c0_10] : memref<32x128xbf16, #tpu.memory_space<vmem>>, vector<32x128xbf16>
      %cst = arith.constant dense<0.000000e+00> : vector<2x128xf32>
      %18 = tpu.matmul %16, %17, %cst {dimension_numbers = #tpu.dot_dimension_numbers<[1], [0], [0], [1], [0, 0, 1, 1], [], []>} : vector<2x32xbf16>, vector<32x128xbf16>, vector<2x128xf32> -> vector<2x128xf32>
      %c0_11 = arith.constant 0 : index
      %c0_12 = arith.constant 0 : index
      %19 = vector.load %arg8[%c0_11, %c0_12] : memref<2x48xf32, #tpu.memory_space<vmem>>, vector<2x48xf32>
      %20 = arith.truncf %19 : vector<2x48xf32> to vector<2x48xbf16>
      %c0_13 = arith.constant 0 : index
      %c0_14 = arith.constant 0 : index
      %21 = vector.load %arg5[%c0_13, %c0_14] : memref<48x128xbf16, #tpu.memory_space<vmem>>, vector<48x128xbf16>
      %cst_15 = arith.constant dense<0.000000e+00> : vector<2x128xf32>
      %22 = tpu.matmul %20, %21, %cst_15 {dimension_numbers = #tpu.dot_dimension_numbers<[1], [0], [0], [1], [0, 0, 1, 1], [], []>} : vector<2x48xbf16>, vector<48x128xbf16>, vector<2x128xf32> -> vector<2x128xf32>
      %23 = arith.addf %18, %22 : vector<2x128xf32>
      %c0_16 = arith.constant 0 : index
      %c0_17 = arith.constant 0 : index
      %24 = vector.load %arg6[%c0_16, %c0_17] : memref<2x128xf32, #tpu.memory_space<vmem>>, vector<2x128xf32>
      tpu.vector_store %arg6[%c0_16, %c0_17], %23 {strides = array<i32>} : memref<2x128xf32, #tpu.memory_space<vmem>>, vector<2x128xf32>,
    } else {
    }
    return
  }
  func.func @transform_0(%arg0: i32, %arg1: i32) -> (i32, i32, i32) {
    %c0_i32 = arith.constant 0 : i32
    %c0_i32_0 = arith.constant 0 : i32
    return %arg0, %arg1, %c0_i32 : i32, i32, i32
  }
  func.func @transform_1(%arg0: i32, %arg1: i32) -> (i32, i32, i32) {
    %c0_i32 = arith.constant 0 : i32
    %0 = arith.minsi %arg1, %c0_i32 : i32
    %c0_i32_0 = arith.constant 0 : i32
    %c0_i32_1 = arith.constant 0 : i32
    return %arg0, %0, %c0_i32_0 : i32, i32, i32
  }
  func.func @transform_2(%arg0: i32, %arg1: i32) -> (i32, i32) {
    %c0_i32 = arith.constant 0 : i32
    %c0_i32_0 = arith.constant 0 : i32
    %c0_i32_1 = arith.constant 0 : i32
    return %c0_i32, %c0_i32_0 : i32, i32
  }
  func.func @transform_3(%arg0: i32, %arg1: i32) -> (i32, i32) {
    %c0_i32 = arith.constant 0 : i32
    %c0_i32_0 = arith.constant 0 : i32
    %c0_i32_1 = arith.constant 0 : i32
    return %c0_i32, %c0_i32_0 : i32, i32
  }
  func.func @transform_4(%arg0: i32, %arg1: i32) -> (i32, i32) {
    %c0_i32 = arith.constant 0 : i32
    %c0_i32_0 = arith.constant 0 : i32
    return %arg0, %c0_i32 : i32, i32
  }
}

</mosaic_0001>

<llo_original>
// kernel: tpu_custom_call.1
$region0: #{tpu_custom_call.1}
  #allocation0 [shape = 'u32[]', space=smem, size = 0x4, offset = 0x4, fixed_abs, tag = 'smem constant byte address 0x4 - core index']
  #allocation1 [shape = 'u32[72,128]{1,0:T(1,128)}', space=vmem, size = 0x9000, scoped, tag = 'internal scratch']
  #allocation2 [shape = 'f32[2,32]{1,0:T(2,128)}', space=vmem, size = 0x400, scoped, tag = 'scratch operand']
  #allocation3 [shape = 'f32[2,48]{1,0:T(2,128)}', space=vmem, size = 0x400, scoped, tag = 'scratch operand']
  %s0 = inlined_call_operand.vmem [shape: bf16[2,10,32], index: 0, kind: input, shape index: {}]
  %s1 = inlined_call_operand.vmem [shape: bf16[2,7,48], index: 1, kind: input, shape index: {}]
  %s2 = inlined_call_operand.hbm [shape: bf16[32,128], index: 2, kind: input, shape index: {}]
  %s3 = inlined_call_operand.vmem [shape: bf16[48,128], index: 3, kind: input, shape index: {}]
  %s4 = inlined_call_operand.hbm [shape: f32[2,128], index: 4, kind: output, shape index: {}]
  %s5 = sld [smem:[#allocation0]]
  $region114: #{tpu_custom_call.1} parent=0
    _
  %s7 = ssub.s32 1, %s5
  %s8 = scalar_select 0, %s7, %s5
  $region1: #{tpu_custom_call.1} parent=0
    #allocation4 [shape = 'u8[8192]{0}', space=vmem, size = 0x2000, scoped, tag = 'input window, operand 0']
    #allocation5 [shape = 'u8[8192]{0}', space=vmem, size = 0x2000, scoped, tag = 'input window, operand 2, single buffered']
    #allocation6 [shape = 's32[2]{0}', space=sflag, size = 0x8, scoped, tag = 'scoped memory for tpu_custom_call.1']
    #allocation7 [shape = 's32[2]{0}', space=sflag, size = 0x8, scoped, tag = 'scoped memory for tpu_custom_call.1']
    #allocation8 [shape = 'u8[1024]{0}', space=vmem, size = 0x400, scoped, tag = 'output window, operand 0, single buffered']
    %9 = vsyncpa [#allocation6], 0
    %10 = vsyncpa [#allocation7], 0
    loop: start=0, step=1, limit=4
    $region2: #{tpu_custom_call.1} parent=1 // loop_pre_header
      _
    $region3: #{tpu_custom_call.1} parent=1 // loop_header
      %s12 = sphi 0, %s16
      %p13 = scmp.ge.s32.totalorder %s12, 4
      %s19 = sphi 0, %s31
      %s20 = sphi 0, %s27
      %s21 = sphi 0, %s19
      %s22 = sphi 0, %s20
      %s23 = sphi 0, %s21
      %s24 = sphi 0, %s22
      %s36 = sphi 0, %s38
      %s39 = sphi 0, %s36
      %s40 = sphi 0, %s39
      %s56 = sphi 0, %s40
      %s68 = sphi 0, %s70
      %s71 = sphi 0, %s68
      %s72 = sphi 0, %s71
      %s88 = sphi 0, %s72
      %s92 = sphi 0, %s92
      %s94 = sphi 0, %s92
      %s95 = sphi 0, %s94
      %s109 = sphi 0, %s95
      %s113 = sphi 0, %s113
      %s115 = sphi 0, %s113
      %s116 = sphi 0, %s115
      %s130 = sphi 0, %s116
      %s136 = sphi 0, %s138
      %s139 = sphi 0, %s136
      %s140 = sphi 0, %s139
      %s156 = sphi 0, %s140
    $region4: #{tpu_custom_call.1} parent=1 // loop_header_branch
      %15 = sbr.rel (%p13) target = $region8
    $region5: #{tpu_custom_call.1} parent=1 // loop_body
      %s17 = ssub.s32 %s12, 1
      %s18 = ssub.s32 %s12, 2
      %s25 = sadd.s32 1, %s20
      %p26 = scmp.ge.s32.totalorder %s25, 2
      %s27 = scalar_select %p26, 0, %s25
      %s28 = sadd.s32 1, %s19
      %s29 = scalar_select %p26, %s28, %s19
      %p30 = scmp.ge.s32.totalorder %s29, 1
      %s31 = scalar_select %p30, 0, %s29
      %s32 = ssub.s32 %s19, %s31
      %s33 = ssub.s32 %s20, %s27
      %s34 = sor.u32 %s32, %s33
      %p35 = scmp.eq.s32.totalorder %s34, 0
      %s37 = sadd.s32 %s36, 1
      %s38 = scalar_select %p35, %s36, %s37
      %p41 = pneg %p35
      %p42 = scmp.eq.s32.totalorder %s12, 1
      %p43 = por %p41, %p42
      %p44 = scmp.ne.s32.totalorder %s36, %s39
      %p45 = scmp.eq.s32.totalorder %s12, 0
      %p46 = por %p44, %p45
      %p47 = scmp.ne.s32.totalorder %s36, %s39
      %p48 = scmp.eq.s32.totalorder %s17, 1
      %p49 = por %p47, %p48
      %p50 = scmp.ne.s32.totalorder %s39, %s40
      %p51 = scmp.eq.s32.totalorder %s17, 0
      %p52 = por %p50, %p51
      %p53 = scmp.ne.s32.totalorder %s39, %s40
      %p54 = scmp.eq.s32.totalorder %s18, 1
      %p55 = por %p53, %p54
      %p57 = scmp.ne.s32.totalorder %s40, %s56
      %p58 = scmp.eq.s32.totalorder %s18, 0
      %p59 = por %p57, %p58
      %p60 = scmp.lt.s32.totalorder %s20, 0
      %s61 = scalar_select %p60, %s20, 0
      %p62 = scmp.lt.s32.totalorder %s27, 0
      %s63 = scalar_select %p62, %s27, 0
      %s64 = ssub.s32 %s19, %s31
      %s65 = ssub.s32 %s61, %s63
      %s66 = sor.u32 %s64, %s65
      %p67 = scmp.eq.s32.totalorder %s66, 0
      %s69 = sadd.s32 %s68, 1
      %s70 = scalar_select %p67, %s68, %s69
      %p73 = pneg %p67
      %p74 = scmp.eq.s32.totalorder %s12, 1
      %p75 = por %p73, %p74
      %p76 = scmp.ne.s32.totalorder %s68, %s71
      %p77 = scmp.eq.s32.totalorder %s12, 0
      %p78 = por %p76, %p77
      %p79 = scmp.ne.s32.totalorder %s68, %s71
      %p80 = scmp.eq.s32.totalorder %s17, 1
      %p81 = por %p79, %p80
      %p82 = scmp.ne.s32.totalorder %s71, %s72
      %p83 = scmp.eq.s32.totalorder %s17, 0
      %p84 = por %p82, %p83
      %p85 = scmp.ne.s32.totalorder %s71, %s72
      %p86 = scmp.eq.s32.totalorder %s18, 1
      %p87 = por %p85, %p86
      %p89 = scmp.ne.s32.totalorder %s72, %s88
      %p90 = scmp.eq.s32.totalorder %s18, 0
      %p91 = por %p89, %p90
      %s93 = sadd.s32 %s92, 1
      %p96 = scmp.eq.s32.totalorder %s12, 1
      %p97 = scmp.ne.s32.totalorder %s92, %s94
      %p98 = scmp.eq.s32.totalorder %s12, 0
      %p99 = por %p97, %p98
      %p100 = scmp.ne.s32.totalorder %s92, %s94
      %p101 = scmp.eq.s32.totalorder %s17, 1
      %p102 = por %p100, %p101
      %p103 = scmp.ne.s32.totalorder %s94, %s95
      %p104 = scmp.eq.s32.totalorder %s17, 0
      %p105 = por %p103, %p104
      %p106 = scmp.ne.s32.totalorder %s94, %s95
      %p107 = scmp.eq.s32.totalorder %s18, 1
      %p108 = por %p106, %p107
      %p110 = scmp.ne.s32.totalorder %s95, %s109
      %p111 = scmp.eq.s32.totalorder %s18, 0
      %p112 = por %p110, %p111
      %s114 = sadd.s32 %s113, 1
      %p117 = scmp.eq.s32.totalorder %s12, 1
      %p118 = scmp.ne.s32.totalorder %s113, %s115
      %p119 = scmp.eq.s32.totalorder %s12, 0
      %p120 = por %p118, %p119
      %p121 = scmp.ne.s32.totalorder %s113, %s115
      %p122 = scmp.eq.s32.totalorder %s17, 1
      %p123 = por %p121, %p122
      %p124 = scmp.ne.s32.totalorder %s115, %s116
      %p125 = scmp.eq.s32.totalorder %s17, 0
      %p126 = por %p124, %p125
      %p127 = scmp.ne.s32.totalorder %s115, %s116
      %p128 = scmp.eq.s32.totalorder %s18, 1
      %p129 = por %p127, %p128
      %p131 = scmp.ne.s32.totalorder %s116, %s130
      %p132 = scmp.eq.s32.totalorder %s18, 0
      %p133 = por %p131, %p132
      %s134 = ssub.s32 %s19, %s31
      %p135 = scmp.eq.s32.totalorder %s134, 0
      %s137 = sadd.s32 %s136, 1
      %s138 = scalar_select %p135, %s136, %s137
      %p141 = pneg %p135
      %p142 = scmp.eq.s32.totalorder %s12, 1
      %p143 = por %p141, %p142
      %p144 = scmp.ne.s32.totalorder %s136, %s139
      %p145 = scmp.eq.s32.totalorder %s12, 0
      %p146 = por %p144, %p145
      %p147 = scmp.ne.s32.totalorder %s136, %s139
      %p148 = scmp.eq.s32.totalorder %s17, 1
      %p149 = por %p147, %p148
      %p150 = scmp.ne.s32.totalorder %s139, %s140
      %p151 = scmp.eq.s32.totalorder %s17, 0
      %p152 = por %p150, %p151
      %p153 = scmp.ne.s32.totalorder %s139, %s140
      %p154 = scmp.eq.s32.totalorder %s18, 1
      %p155 = por %p153, %p154
      %p157 = scmp.ne.s32.totalorder %s140, %s156
      %p158 = scmp.eq.s32.totalorder %s18, 0
      %p159 = por %p157, %p158
      %p160 = scmp.le.s32.totalorder 1, %s12
      %p161 = scmp.lt.s32.totalorder %s12, 3
      %p162 = pnand %p160, %p161
      %p163 = pneg %p162
      // Predicated region
      $region9: #{tpu_custom_call.1} parent=5 // pred_check
        _
      $region10: #{tpu_custom_call.1} parent=5 // pred_check_branch
        %165 = sbr.rel (%p162) target = $region12
      $region11: #{tpu_custom_call.1} parent=5 // pred_region
        %s166 = ssub.s32 %s12, 1
        // Predicated region
        $region13: #{tpu_custom_call.1} parent=11 // pred_check
          %p167 = pneg %p105
        $region14: #{tpu_custom_call.1} parent=11 // pred_check_branch
          %169 = sbr.rel (%p167) target = $region16
        $region15: #{tpu_custom_call.1} parent=11 // pred_region
          %171 = vsyncadd [#allocation6], 0
          %s172 = sshll.u32 %s2, 4
          %s173 = int_to_ptr.hbm [resolvable:$true] %s172
          %s174 = sshll.u32 [#allocation5], 4
          %s175 = int_to_ptr.vmem [resolvable:$true] %s174
          %180 = dma.hbm_to_vmem [thread:$0]  %s173, 256, %s175, [#allocation6], 64, 64, 4
        $region16: #{tpu_custom_call.1} parent=11 // pred_fallthru
          _
        // Predicated region
        $region17: #{tpu_custom_call.1} parent=11 // pred_check
          %p181 = pneg %p126
        $region18: #{tpu_custom_call.1} parent=11 // pred_check_branch
          %183 = sbr.rel (%p181) target = $region20
        $region19: #{tpu_custom_call.1} parent=11 // pred_region
          _
        $region20: #{tpu_custom_call.1} parent=11 // pred_fallthru
          _
      $region12: #{tpu_custom_call.1} parent=5 // pred_fallthru
        _
      %p184 = scmp.lt.s32.totalorder %s12, 2
      // Predicated region
      $region21: #{tpu_custom_call.1} parent=5 // pred_check
        %p185 = pneg %p184
      $region22: #{tpu_custom_call.1} parent=5 // pred_check_branch
        %187 = sbr.rel (%p185) target = $region24
      $region23: #{tpu_custom_call.1} parent=5 // pred_region
        // Predicated region
        $region25: #{tpu_custom_call.1} parent=23 // pred_check
          %p188 = pneg %p46
        $region26: #{tpu_custom_call.1} parent=23 // pred_check_branch
          %190 = sbr.rel (%p188) target = $region28
        $region27: #{tpu_custom_call.1} parent=23 // pred_region
          %s191 = sand.u32 %s36, 1
          %s192 = sand.u32 %s36, 1
          %s193 = smul.addr %s192, 8
          %s194 = scalar_lea.vmem [#allocation4], %s193
          %s195 = smul.u32 2, %s19
          %s196 = smul.addr %s195, 2
          %s197 = sadd.s32 %s20, %s196
          %s198 = smul.addr %s197, 4
          %s199 = scalar_lea.vmem %s0, %s198
          // Predicated region
          $region29: #{tpu_custom_call.1} parent=27 // pred_check
            _
          $region30: #{tpu_custom_call.1} parent=27 // pred_check_branch
            %201 = sbr.rel (0) target = $region32
          $region31: #{tpu_custom_call.1} parent=27 // pred_region
            // Predicated region
            $region33: #{tpu_custom_call.1} parent=31 // pred_check
              _
            $region34: #{tpu_custom_call.1} parent=31 // pred_check_branch
              %203 = sbr.rel target = $region36
            $region35: #{tpu_custom_call.1} parent=31 // pred_region
              // Predicated region
              $region48: #{tpu_custom_call.1} parent=35 // pred_check
                _
              $region49: #{tpu_custom_call.1} parent=35 // pred_check_branch
                %221 = sbr.rel (0) target = $region51
              $region50: #{tpu_custom_call.1} parent=35 // pred_region
                loop: start=0, step=1, limit=1
                $region52: #{tpu_custom_call.1} parent=50 // loop_pre_header
                  _
                $region53: #{tpu_custom_call.1} parent=50 // loop_header
                  %s223 = sphi 0, %s227
                  %p224 = scmp.ge.s32.totalorder %s223, 1
                  %s228 = sphi %s199, %s199
                  %s229 = sphi %s194, %s194
                $region54: #{tpu_custom_call.1} parent=50 // loop_header_branch
                  %226 = sbr.rel (%p224) target = $region58
                $region55: #{tpu_custom_call.1} parent=50 // loop_body
                  _
                $region56: #{tpu_custom_call.1} parent=50 // loop_footer
                  %s227 = sadd.s32 1, %s223
                $region57: #{tpu_custom_call.1} parent=50 // loop_footer_branch
                  %222 = sbr.rel target = $region53
                $region58: #{tpu_custom_call.1} parent=50 // loop_exit
                  _
                %s231 = ssub.s32 16, 1
                loop: start=0, step=1, limit=1
                $region59: #{tpu_custom_call.1} parent=50 // loop_pre_header
                  _
                $region60: #{tpu_custom_call.1} parent=50 // loop_header
                  %s233 = sphi 0, %s237
                  %p234 = scmp.ge.s32.totalorder %s233, 1
                  %s238 = sphi %s199, %s199
                  %s239 = sphi %s194, %s194
                $region61: #{tpu_custom_call.1} parent=50 // loop_header_branch
                  %236 = sbr.rel (%p234) target = $region65
                $region62: #{tpu_custom_call.1} parent=50 // loop_body
                  %v240 = vld [vmem:[%s238] sm:%s231]
                  %241 = vst [vmem:[%s239] sm:%s231] %v240
                  %v242 = vld [vmem:[%s238 + $0x8] sm:%s231]
                  %243 = vst [vmem:[%s239 + $0x4] sm:%s231] %v242
                $region63: #{tpu_custom_call.1} parent=50 // loop_footer
                  %s237 = sadd.s32 1, %s233
                $region64: #{tpu_custom_call.1} parent=50 // loop_footer_branch
                  %232 = sbr.rel target = $region60
                $region65: #{tpu_custom_call.1} parent=50 // loop_exit
                  _
              $region51: #{tpu_custom_call.1} parent=35 // pred_fallthru
                _
            $region36: #{tpu_custom_call.1} parent=31 // pred_fallthru
              _
            // Predicated region
            $region37: #{tpu_custom_call.1} parent=31 // pred_check
              _
            $region38: #{tpu_custom_call.1} parent=31 // pred_check_branch
              %205 = sbr.rel (0) target = $region40
            $region39: #{tpu_custom_call.1} parent=31 // pred_region
              %s207 = ssub.s32 16, 1
              loop: start=0, step=1, limit=1
              $region41: #{tpu_custom_call.1} parent=39 // loop_pre_header
                _
              $region42: #{tpu_custom_call.1} parent=39 // loop_header
                %s209 = sphi 0, %s213
                %p210 = scmp.ge.s32.totalorder %s209, 1
                %s214 = sphi %s199, %s199
                %s215 = sphi %s194, %s194
              $region43: #{tpu_custom_call.1} parent=39 // loop_header_branch
                %212 = sbr.rel (%p210) target = $region47
              $region44: #{tpu_custom_call.1} parent=39 // loop_body
                %v216 = vld [vmem:[%s214] sm:%s207]
                %217 = vst [vmem:[%s215] sm:%s207] %v216
                %v218 = vld [vmem:[%s214 + $0x8] sm:%s207]
                %219 = vst [vmem:[%s215 + $0x4] sm:%s207] %v218
              $region45: #{tpu_custom_call.1} parent=39 // loop_footer
                %s213 = sadd.s32 1, %s209
              $region46: #{tpu_custom_call.1} parent=39 // loop_footer_branch
                %208 = sbr.rel target = $region42
              $region47: #{tpu_custom_call.1} parent=39 // loop_exit
                _
            $region40: #{tpu_custom_call.1} parent=31 // pred_fallthru
              _
          $region32: #{tpu_custom_call.1} parent=27 // pred_fallthru
            _
          %244 = vnop
        $region28: #{tpu_custom_call.1} parent=23 // pred_fallthru
          _
        // Predicated region
        $region66: #{tpu_custom_call.1} parent=23 // pred_check
          %p245 = pneg %p78
        $region67: #{tpu_custom_call.1} parent=23 // pred_check_branch
          %247 = sbr.rel (%p245) target = $region69
        $region68: #{tpu_custom_call.1} parent=23 // pred_region
          %p248 = scmp.lt.s32.totalorder %s20, 0
          %s249 = scalar_select %p248, %s20, 0
          %s250 = smul.u32 2, %s19
          %p251 = scmp.lt.s32.totalorder %s250, 1
          %s252 = scalar_select %p251, %s250, 1
          %p253 = scmp.lt.s32.totalorder %s249, 0
          %s254 = scalar_select %p253, %s249, 0
          %s255 = sadd.s32 %s254, %s252
          %s256 = smul.addr %s255, 4
          %s257 = scalar_lea.vmem %s1, %s256
          %p258 = scmp.lt.s32.totalorder %s20, 0
          %s259 = scalar_select %p258, %s20, 0
          %s260 = smul.u32 2, %s19
        $region69: #{tpu_custom_call.1} parent=23 // pred_fallthru
          _
      $region24: #{tpu_custom_call.1} parent=5 // pred_fallthru
        _
      %p261 = scmp.le.s32.totalorder 1, %s12
      %p262 = scmp.lt.s32.totalorder %s12, 3
      %p263 = pnand %p261, %p262
      %p264 = pneg %p263
      // Predicated region
      $region70: #{tpu_custom_call.1} parent=5 // pred_check
        _
      $region71: #{tpu_custom_call.1} parent=5 // pred_check_branch
        %266 = sbr.rel (%p263) target = $region73
      $region72: #{tpu_custom_call.1} parent=5 // pred_region
        %s267 = ssub.s32 %s12, 1
        %s268 = sand.u32 %s39, 1
        %s269 = sand.u32 %s39, 1
        %s270 = smul.addr %s269, 8
        %s271 = scalar_lea.vmem [#allocation4], %s270
        // Predicated region
        $region74: #{tpu_custom_call.1} parent=72 // pred_check
          %p272 = pneg %p52
        $region75: #{tpu_custom_call.1} parent=72 // pred_check_branch
          %274 = sbr.rel (%p272) target = $region77
        $region76: #{tpu_custom_call.1} parent=72 // pred_region
          _
        $region77: #{tpu_custom_call.1} parent=72 // pred_fallthru
          _
        // Predicated region
        $region78: #{tpu_custom_call.1} parent=72 // pred_check
          %p275 = pneg %p105
        $region79: #{tpu_custom_call.1} parent=72 // pred_check_branch
          %277 = sbr.rel (%p275) target = $region81
        $region80: #{tpu_custom_call.1} parent=72 // pred_region
          %279 = dma.done [#allocation6], 256
        $region81: #{tpu_custom_call.1} parent=72 // pred_fallthru
          _
        %s280 = sand.u32 %s39, 1
        %s281 = sand.u32 %s39, 1
        %s282 = smul.addr %s281, 8
        %s283 = scalar_lea.vmem [#allocation4], %s282
        %p284 = pneg %p52
        %p285 = pneg %p49
        %p286 = scmp.lt.s32.totalorder %s22, 0
        %s287 = scalar_select %p286, %s22, 0
        %s288 = smul.u32 2, %s21
        %p289 = scmp.lt.s32.totalorder %s288, 1
        %s290 = scalar_select %p289, %s288, 1
        %p291 = scmp.lt.s32.totalorder %s287, 0
        %s292 = scalar_select %p291, %s287, 0
        %s293 = sadd.s32 %s292, %s290
        %s294 = smul.addr %s293, 4
        %s295 = scalar_lea.vmem %s1, %s294
        %p296 = pneg %p84
        %p297 = pneg %p81
        %p298 = pneg %p105
        %p299 = pneg %p102
        %p300 = pneg %p126
        %p301 = pneg %p123
        %p302 = pneg %p152
        %p303 = pneg %p149
        %s304 = smul.u32 2, %s21
        %p305 = scmp.lt.s32.totalorder %s22, 0
        %s306 = scalar_select %p305, %s22, 0
        %s307 = smul.u32 2, %s21
        %p308 = scmp.lt.s32.totalorder %s307, 1
        %s309 = scalar_select %p308, %s307, 1
        %p310 = scmp.lt.s32.totalorder %s306, 0
        %s311 = scalar_select %p310, %s306, 0
        %s312 = sadd.s32 %s311, %s309
        %s313 = smul.addr %s312, 4
        %s314 = scalar_lea.vmem %s1, %s313
        %p315 = scmp.lt.s32.totalorder %s22, 0
        %s316 = scalar_select %p315, %s22, 0
        %s317 = smul.u32 2, %s21
        %p319 = scmp.eq.s32.totalorder %s22, 0
        // Predicated region
        $region82: #{tpu_custom_call.1} parent=72 // pred_check
          %p320 = pneg %p319
        $region83: #{tpu_custom_call.1} parent=72 // pred_check_branch
          %322 = sbr.rel (%p320) target = $region85
        $region84: #{tpu_custom_call.1} parent=72 // pred_region
          %vm323 = vcmask 254976
          %324 = vst.msk [vmem:[#allocation2] sm:$0x3] %vm323, 0.0
          %vm325 = vcmask 386048
          %326 = vst.msk [vmem:[#allocation3] sm:$0x3] %vm325, 0.0
        $region85: #{tpu_custom_call.1} parent=72 // pred_fallthru
          _
        %p327 = scmp.lt.s32.totalorder %s22, 1
        // Predicated region
        $region86: #{tpu_custom_call.1} parent=72 // pred_check
          %p328 = pneg %p327
        $region87: #{tpu_custom_call.1} parent=72 // pred_check_branch
          %330 = sbr.rel (%p328) target = $region89
        $region88: #{tpu_custom_call.1} parent=72 // pred_region
          %v331 = vld [vmem:[#allocation2] sm:$0x3]
          %v332 = vld [vmem:[%s271] sm:$0xf]
          %v333 = vld [vmem:[%s271 + $0x4] sm:$0xf]
          %v334 = vunpack.c.l.bf16 %v332
          %v335 = vunpack.c.l.bf16 %v333
          %vm336 = vcmask 261120
          %v337 = vsel %vm336, %v334, 0.0
          %v338 = vrot.slane %v337, 4
          %v339 = vadd.f32 %v337, %v338
          %v340 = vrot.slane %v339, 2
          %v341 = vadd.f32 %v339, %v340
          %v342 = vrot.slane %v341, 1
          %v343 = vadd.f32 %v341, %v342
          %v344 = vsel %vm336, %v335, 0.0
          %v345 = vrot.slane %v344, 4
          %v346 = vadd.f32 %v344, %v345
          %v347 = vrot.slane %v346, 2
          %v348 = vadd.f32 %v346, %v347
          %v349 = vrot.slane %v348, 1
          %v350 = vadd.f32 %v348, %v349
          %vm353 = vcmask 1041409
          %v354 = vsel %vm353, %v350, %v343
          %v356 = vadd.f32 %v331, %v354
          %vm357 = vcmask 254976
          %358 = vst.msk [vmem:[#allocation2] sm:$0x3] %vm357, %v356
        $region89: #{tpu_custom_call.1} parent=72 // pred_fallthru
          _
        %p359 = scmp.eq.s32.totalorder %s22, 1
        // Predicated region
        $region90: #{tpu_custom_call.1} parent=72 // pred_check
          %p360 = pneg %p359
        $region91: #{tpu_custom_call.1} parent=72 // pred_check_branch
          %362 = sbr.rel (%p360) target = $region93
        $region92: #{tpu_custom_call.1} parent=72 // pred_region
          %v363 = vlaneseq
          %v364 = vshrl.u32 %v363, 7
          %vm365 = vcmp.lt.s32.totalorder %v364, 2
          %v366 = vld [vmem:[%s271] sm:$0xf]
          %v367 = vld [vmem:[%s271 + $0x4] sm:$0xf]
          %v368 = vunpack.c.l.bf16 %v366
          %v369 = vunpack.c.l.bf16 %v367
          %v370 = vsel %vm365, %v368, 0.0
          %v371 = vsel %vm365, %v369, 0.0
          %v372 = vld [vmem:[#allocation2] sm:$0x3]
          %vm373 = vcmask 261120
          %v374 = vsel %vm373, %v370, 0.0
          %v375 = vrot.slane %v374, 4
          %v376 = vadd.f32 %v374, %v375
          %v377 = vrot.slane %v376, 2
          %v378 = vadd.f32 %v376, %v377
          %v379 = vrot.slane %v378, 1
          %v380 = vadd.f32 %v378, %v379
          %v381 = vsel %vm373, %v371, 0.0
          %v382 = vrot.slane %v381, 4
          %v383 = vadd.f32 %v381, %v382
          %v384 = vrot.slane %v383, 2
          %v385 = vadd.f32 %v383, %v384
          %v386 = vrot.slane %v385, 1
          %v387 = vadd.f32 %v385, %v386
          %vm390 = vcmask 1041409
          %v391 = vsel %vm390, %v387, %v380
          %v393 = vadd.f32 %v372, %v391
          %vm394 = vcmask 254976
          %395 = vst.msk [vmem:[#allocation2] sm:$0x3] %vm394, %v393
        $region93: #{tpu_custom_call.1} parent=72 // pred_fallthru
          _
        // Predicated region
        $region94: #{tpu_custom_call.1} parent=72 // pred_check
          %p396 = pneg %p327
        $region95: #{tpu_custom_call.1} parent=72 // pred_check_branch
          %398 = sbr.rel (%p396) target = $region97
        $region96: #{tpu_custom_call.1} parent=72 // pred_region
          %v399 = vld [vmem:[#allocation3] sm:$0x3]
          %v400 = vld [vmem:[%s314] sm:$0xf]
          %v401 = vld [vmem:[%s314 + $0x4] sm:$0xf]
          %v402 = vunpack.c.l.bf16 %v400
          %v403 = vunpack.c.l.bf16 %v401
          %vm404 = vcmask 391168
          %v405 = vsel %vm404, %v402, 0.0
          %v406 = vrot.slane %v405, 4
          %v407 = vadd.f32 %v405, %v406
          %v408 = vrot.slane %v407, 2
          %v409 = vadd.f32 %v407, %v408
          %v410 = vrot.slane %v409, 1
          %v411 = vadd.f32 %v409, %v410
          %v412 = vsel %vm404, %v403, 0.0
          %v413 = vrot.slane %v412, 4
          %v414 = vadd.f32 %v412, %v413
          %v415 = vrot.slane %v414, 2
          %v416 = vadd.f32 %v414, %v415
          %v417 = vrot.slane %v416, 1
          %v418 = vadd.f32 %v416, %v417
          %vm421 = vcmask 1041409
          %v422 = vsel %vm421, %v418, %v411
          %v424 = vadd.f32 %v399, %v422
          %vm425 = vcmask 386048
          %426 = vst.msk [vmem:[#allocation3] sm:$0x3] %vm425, %v424
        $region97: #{tpu_custom_call.1} parent=72 // pred_fallthru
          _
        // Predicated region
        $region98: #{tpu_custom_call.1} parent=72 // pred_check
          %p427 = pneg %p359
        $region99: #{tpu_custom_call.1} parent=72 // pred_check_branch
          %429 = sbr.rel (%p427) target = $region101
        $region100: #{tpu_custom_call.1} parent=72 // pred_region
          %v430 = vld [vmem:[#allocation2] sm:$0x3]
          %v431 = vpack.c.bf16 %v430, %v430
          %v432 = vld [vmem:[#allocation5] sm:$0xf]
          %v433 = vld [vmem:[#allocation5 + $0x4] sm:$0xf]
          %v434 = vld [vmem:[#allocation5 + $0x8] sm:$0xf]
          %v435 = vld [vmem:[#allocation5 + $0xc] sm:$0xf]
          %v436 = vld [vmem:[#allocation3] sm:$0x3]
          %v437 = vpack.c.bf16 %v436, %v436
          %v438 = vld [vmem:[%s3] sm:$0xf]
          %v439 = vld [vmem:[%s3 + $0x4] sm:$0xf]
          %v440 = vld [vmem:[%s3 + $0x8] sm:$0xf]
          %v441 = vld [vmem:[%s3 + $0xc] sm:$0xf]
          %v442 = vld [vmem:[%s3 + $0x10] sm:$0xf]
          %v443 = vld [vmem:[%s3 + $0x14] sm:$0xf]
          %v450 = vunpack.c.l.b16 %v438
          %v451 = vunpack.c.l.b16 %v439
          %v452 = vunpack.c.l.b16 %v440
          %v453 = vunpack.c.l.b16 %v441
          %v454 = vunpack.c.l.b16 %v442
          %v455 = vunpack.c.l.b16 %v443
          %v456 = vpack.c.b16 %v451, %v450
          %v457 = vpack.c.b16 %v453, %v452
          %v458 = vpack.c.b16 %v455, %v454
          %vm462 = vcmask 392192
          %v464 = vsel %vm462, %v437, 0
          %466 = vmatpush.bf16.msra.mxu0 0
          %467 = vmatpush.bf16.msra.mxu0 0
          %468 = vmatpush.bf16.msra.mxu0 0
          %469 = vmatpush.bf16.msra.mxu0 0
          %470 = vmatpush.bf16.msra.mxu0 0
          %471 = vmatpush.bf16.msra.mxu0 %v458
          %472 = vmatpush.bf16.msra.mxu0 %v457
          %473 = vmatpush.bf16.msra.mxu0 %v456
          %474 = vmatmul.bf16.gmra.mxu0 %v464
          %v475 = vpop.f32.mrf.mxu0
          %v476 = vadd.f32 0.0, %v475
          %v477 = vpop.f32.mrf.mxu0
          %478 = vdwg.mxu0
          %v483 = vunpack.c.l.b16 %v432
          %v484 = vunpack.c.l.b16 %v433
          %v485 = vunpack.c.l.b16 %v434
          %v486 = vunpack.c.l.b16 %v435
          %v487 = vpack.c.b16 %v484, %v483
          %v488 = vpack.c.b16 %v486, %v485
          %vm491 = vcmask 261120
          %v493 = vsel %vm491, %v431, 0
          %495 = vmatpush.bf16.msra.mxu0 0
          %496 = vmatpush.bf16.msra.mxu0 0
          %497 = vmatpush.bf16.msra.mxu0 0
          %498 = vmatpush.bf16.msra.mxu0 0
          %499 = vmatpush.bf16.msra.mxu0 0
          %500 = vmatpush.bf16.msra.mxu0 0
          %501 = vmatpush.bf16.msra.mxu0 %v488
          %502 = vmatpush.bf16.msra.mxu0 %v487
          %503 = vmatmul.bf16.gmra.mxu0 %v493
          %v504 = vpop.f32.mrf.mxu0
          %v505 = vadd.f32 %v476, %v504
          %v506 = vpop.f32.mrf.mxu0
          %507 = vdwg.mxu0
          %508 = vst [vmem:[#allocation8] sm:$0x3] %v505
        $region101: #{tpu_custom_call.1} parent=72 // pred_fallthru
          _
        // Predicated region
        $region102: #{tpu_custom_call.1} parent=72 // pred_check
          %p509 = pneg %p149
        $region103: #{tpu_custom_call.1} parent=72 // pred_check_branch
          %511 = sbr.rel (%p509) target = $region105
        $region104: #{tpu_custom_call.1} parent=72 // pred_region
          %513 = vsyncadd [#allocation7], 0
          %s514 = smul.addr %s21, 2
          %s515 = scalar_lea.hbm %s4, %s514
          %s517 = sshll.u32 [#allocation8], 4
          %s518 = int_to_ptr.vmem [resolvable:$true] %s517
          %s519 = sshll.u32 %s515, 4
          %s520 = int_to_ptr.hbm [resolvable:$true] %s519
          %522 = dma.vmem_to_hbm [thread:$0]  %s518, 32, %s520, [#allocation7]
        $region105: #{tpu_custom_call.1} parent=72 // pred_fallthru
          _
        // Predicated region
        $region106: #{tpu_custom_call.1} parent=72 // pred_check
          %p523 = pneg %p149
        $region107: #{tpu_custom_call.1} parent=72 // pred_check_branch
          %525 = sbr.rel (%p523) target = $region109
        $region108: #{tpu_custom_call.1} parent=72 // pred_region
          %527 = dma.done [#allocation7], 32
        $region109: #{tpu_custom_call.1} parent=72 // pred_fallthru
          _
      $region73: #{tpu_custom_call.1} parent=5 // pred_fallthru
        _
      %p528 = scmp.le.s32.totalorder 2, %s12
      // Predicated region
      $region110: #{tpu_custom_call.1} parent=5 // pred_check
        %p529 = pneg %p528
      $region111: #{tpu_custom_call.1} parent=5 // pred_check_branch
        %531 = sbr.rel (%p529) target = $region113
      $region112: #{tpu_custom_call.1} parent=5 // pred_region
        %s532 = ssub.s32 %s12, 2
      $region113: #{tpu_custom_call.1} parent=5 // pred_fallthru
        _
    $region6: #{tpu_custom_call.1} parent=1 // loop_footer
      %s16 = sadd.s32 1, %s12
    $region7: #{tpu_custom_call.1} parent=1 // loop_footer_branch
      %11 = sbr.rel target = $region3
    $region8: #{tpu_custom_call.1} parent=1 // loop_exit
      _
    %533 = vsyncpa [#allocation6], 1
    %s534 = scalar_lea.sflag [#allocation6], 1
    %535 = vsyncpa %s534, 1
    %536 = vsyncpa [#allocation7], 1
    %s537 = scalar_lea.sflag [#allocation7], 1
    %538 = vsyncpa %s537, 1

</llo_original>
